<compile_context>
chip_gen: v5e
topology: v5e:2x2
jax: 0.10.0
libtpu: 0.0.40
codegen_flags: <defaults>
</compile_context>

<pallas_src>
import jax
import jax.numpy as jnp
from jax.experimental import pallas as pl
from jax.experimental.pallas import tpu as pltpu


def _gcn_state_kernel(w_ref, x_ref, o_ref):
    # w_ref: (C, C) resident in VMEM (loaded once for the whole grid)
    # x_ref: (TB, C, TN)   o_ref: (TB, C, TN)
    w = w_ref[...]
    tb = x_ref.shape[0]  # static
    for b in range(tb):  # small static unroll; each iter is one MXU matmul
        x = x_ref[b]                                              # (C, TN)
        h = jnp.dot(w, x, preferred_element_type=jnp.float32)     # MXU, f32 acc
        # Residual add in f32, single cast on the way out.
        o_ref[b] = (h + x.astype(jnp.float32)).astype(o_ref.dtype)


def _vmem_capacity_bytes():
    """Generation-aware VMEM capacity; conservative fallback (v7x per-TC)."""
    try:
        return int(pltpu.get_tpu_info().vmem_capacity_bytes)
    except Exception:
        return 64 << 20


def _choose_tiles(B, C, N, itemsize, block_budget_bytes):
    """Pick (TB, TN) so the working set (double-buffered in/out blocks plus
    f32 intermediates) fits in block_budget_bytes, the lane dim stays dense,
    and the grid has an even, reasonably large number of steps."""
    # Per column of one batch: in+out blocks double-buffered (4 * itemsize)
    # plus the f32 matmul result and f32 residual upcast (2 * 4 bytes).
    bytes_per_col = C * (4 * itemsize + 8)

    # Lane tile: multiple of 128, or the full row when N <= 128.
    if N <= 128:
        tn = N
    else:
        max_tn = max(128, ((block_budget_bytes // bytes_per_col) // 128) * 128)
        tn = max(128, min(max_tn, (N // 128) * 128))
    n_col_blocks = -(-N // tn)  # cdiv

    # Batch folding: fill the budget, then prefer >=8 even grid steps and
    # TB that divides B (no partial batch edge block) when there is slack.
    per_batch = tn * bytes_per_col
    max_tb = int(max(1, min(B, 32, block_budget_bytes // max(1, per_batch))))
    best_tb, best_rank = 1, -1
    for tb in range(max_tb, 0, -1):
        total = (-(-B // tb)) * n_col_blocks
        base = 2 if total >= 8 else (1 if total >= 2 else 0)
        rank = base * 4 + (2 if total % 2 == 0 else 0) + (1 if B % tb == 0 else 0)
        if rank > best_rank:
            best_rank, best_tb = rank, tb
    return best_tb, tn


def gcn_state_forward(x, w):
    """x: (B, C, N), w: (C, C)  ->  (B, C, N) = W @ x (per batch) + x."""
    B, C, N = x.shape
    assert w.shape == (C, C)

    # Same-dtype MXU operands (and half the resident weight bytes for bf16).
    w = w.astype(x.dtype)

    itemsize = jnp.dtype(x.dtype).itemsize
    w_bytes = C * C * itemsize

    capacity = _vmem_capacity_bytes()
    # ~25% of VMEM for the pipelined block working set (v7x: ~16 MiB,
    # v5e/v6e: ~32 MiB), minus the resident weight.
    block_budget = max((capacity // 4) - w_bytes, 1 << 20)
    tb, tn = _choose_tiles(B, C, N, itemsize, block_budget)
    grid = (pl.cdiv(B, tb), pl.cdiv(N, tn))

    # Real footprint: double-buffered in/out blocks + f32 intermediates + weight.
    vmem_need = 4 * tb * C * tn * itemsize + 2 * tb * C * tn * 4 + w_bytes
    vmem_limit_bytes = int(min(int(capacity * 0.9), max(2 * vmem_need, 32 << 20)))

    cost = pl.CostEstimate(
        flops=2 * B * C * C * N + B * C * N,          # matmul + residual add
        transcendentals=0,
        bytes_accessed=2 * B * C * N * itemsize + w_bytes,
    )

    return pl.pallas_call(
        _gcn_state_kernel,
        out_shape=jax.ShapeDtypeStruct((B, C, N), x.dtype),
        grid_spec=pltpu.PrefetchScalarGridSpec(
            num_scalar_prefetch=0,
            grid=grid,
            in_specs=[
                # Whole weight resident in VMEM once: no per-step DMA,
                # no redundant double buffer.
                pl.BlockSpec(memory_space=pltpu.MemorySpace.VMEM),
                # Lane-dense (TB, C, TN) slab of x per grid step.
                pl.BlockSpec((tb, C, tn), lambda i, j: (i, 0, j)),
            ],
            out_specs=pl.BlockSpec((tb, C, tn), lambda i, j: (i, 0, j)),
        ),
        compiler_params=pltpu.CompilerParams(
            # Both axes independent -> megacore / 2-TC sharding on v7x.
            dimension_semantics=("parallel", "parallel"),
            vmem_limit_bytes=vmem_limit_bytes,
        ),
        cost_estimate=cost,
    )(w, x)


if __name__ == "__main__":
    key = jax.random.PRNGKey(0)

    # Case 1: typical small GloRe shapes (lane-dense N).
    B, num_state, num_node = 2, 32, 128
    kx, kw, key = jax.random.split(key, 3)
    x = jax.random.normal(kx, (B, num_state, num_node), dtype=jnp.float32)
    # Conv1d(num_state, num_state, 1, bias=False) weight: (out_c, in_c, 1) -> (out_c, in_c).
    w = jax.random.normal(kw, (num_state, num_state), dtype=jnp.float32) * (
        1.0 / jnp.sqrt(num_state)
    )
    out = jax.block_until_ready(gcn_state_forward(x, w))
    ref = jnp.einsum("oc,bcn->bon", w, x) + x
    assert out.shape == (B, num_state, num_node)
    assert jnp.allclose(out, ref, atol=1e-4, rtol=1e-4)

    # Case 2: ragged N and odd B -> exercises the cdiv / partial-edge-block path.
    B2, C2, N2 = 3, 48, 200
    kx2, kw2 = jax.random.split(key)
    x2 = jax.random.normal(kx2, (B2, C2, N2), dtype=jnp.float32)
    w2 = jax.random.normal(kw2, (C2, C2), dtype=jnp.float32) * (1.0 / jnp.sqrt(C2))
    out2 = jax.block_until_ready(gcn_state_forward(x2, w2))
    ref2 = jnp.einsum("oc,bcn->bon", w2, x2) + x2
    assert out2.shape == (B2, C2, N2)
    assert jnp.allclose(out2, ref2, atol=1e-4, rtol=1e-4)

    print("KERNEL_OK")
</pallas_src>

<mosaic_0001>
module attributes {stable_mosaic.version = 11 : i64} {
  func.func @_gcn_state_kernel(%arg0: i32, %arg1: i32, %arg2: memref<32x32xf32, #tpu.memory_space<vmem>>, %arg3: memref<1x32x128xf32, #tpu.memory_space<vmem>>, %arg4: memref<1x32x128xf32, #tpu.memory_space<vmem>>) attributes {dimension_semantics = [#tpu.dimension_semantics<parallel>, #tpu.dimension_semantics<parallel>], iteration_bounds = array<i64: 2, 1>, scalar_prefetch = 0 : i64, scratch_operands = 0 : i64, tpu.core_type = #tpu.core_type<tc>, window_params = [{pipeline_mode = #tpu.pipeline_mode<synchronous>, transform_indices = @transform_0, window_bounds = array<i64: 32, 32>}, {transform_indices = @transform_1, window_bounds = array<i64: 1, 32, 128>}, {transform_indices = @transform_2, window_bounds = array<i64: 1, 32, 128>}]} {
    %c0 = arith.constant 0 : index
    %c0_0 = arith.constant 0 : index
    %0 = vector.load %arg2[%c0, %c0_0] : memref<32x32xf32, #tpu.memory_space<vmem>>, vector<32x32xf32>
    %c0_1 = arith.constant 0 : index
    %c0_2 = arith.constant 0 : index
    %c0_3 = arith.constant 0 : index
    %1 = vector.load %arg3[%c0_1, %c0_2, %c0_3] : memref<1x32x128xf32, #tpu.memory_space<vmem>>, vector<1x32x128xf32>
    %2 = vector.shape_cast %1 : vector<1x32x128xf32> to vector<32x128xf32>
    %cst = arith.constant dense<0.000000e+00> : vector<32x128xf32>
    %3 = tpu.matmul %0, %2, %cst {dimension_numbers = #tpu.dot_dimension_numbers<[1], [0], [0], [1], [0, 0, 1, 1], [], []>} : vector<32x32xf32>, vector<32x128xf32>, vector<32x128xf32> -> vector<32x128xf32>
    %4 = arith.addf %3, %2 : vector<32x128xf32>
    %c0_4 = arith.constant 0 : index
    %c0_5 = arith.constant 0 : index
    %c0_6 = arith.constant 0 : index
    %5 = vector.load %arg4[%c0_4, %c0_5, %c0_6] : memref<1x32x128xf32, #tpu.memory_space<vmem>>, vector<1x32x128xf32>
    %6 = vector.shape_cast %5 : vector<1x32x128xf32> to vector<32x128xf32>
    %7 = vector.shape_cast %4 : vector<32x128xf32> to vector<1x32x128xf32>
    tpu.vector_store %arg4[%c0_4, %c0_5, %c0_6], %7 {strides = array<i32>} : memref<1x32x128xf32, #tpu.memory_space<vmem>>, vector<1x32x128xf32>,
    return
  }
  func.func @transform_0(%arg0: i32, %arg1: i32) -> (i32, i32) {
    %c0_i32 = arith.constant 0 : i32
    %c0_i32_0 = arith.constant 0 : i32
    %c0_i32_1 = arith.constant 0 : i32
    return %c0_i32, %c0_i32_0 : i32, i32
  }
  func.func @transform_1(%arg0: i32, %arg1: i32) -> (i32, i32, i32) {
    %c0_i32 = arith.constant 0 : i32
    %c0_i32_0 = arith.constant 0 : i32
    return %arg0, %c0_i32, %arg1 : i32, i32, i32
  }
  func.func @transform_2(%arg0: i32, %arg1: i32) -> (i32, i32, i32) {
    %c0_i32 = arith.constant 0 : i32
    %c0_i32_0 = arith.constant 0 : i32
    return %arg0, %c0_i32, %arg1 : i32, i32, i32
  }
}

</mosaic_0001>

<llo_original>
// kernel: tpu_custom_call.1
$region0: #{tpu_custom_call.1}
  #allocation0 [shape = 'u32[]', space=smem, size = 0x4, offset = 0x4, fixed_abs, tag = 'smem constant byte address 0x4 - core index']
  #allocation1 [shape = 'u32[72,128]{1,0:T(1,128)}', space=vmem, size = 0x9000, scoped, tag = 'internal scratch']
  %s0 = inlined_call_operand.hbm [shape: f32[32,32], index: 0, kind: input, shape index: {}]
  %s1 = inlined_call_operand.hbm [shape: f32[2,32,128], index: 1, kind: input, shape index: {}]
  %s2 = inlined_call_operand.hbm [shape: f32[2,32,128], index: 2, kind: output, shape index: {}]
  %s3 = sld [smem:[#allocation0]]
  $region49: #{tpu_custom_call.1} parent=0
    _
  %s5 = ssub.s32 1, %s3
  %s6 = scalar_select 0, %s5, %s3
  $region1: #{tpu_custom_call.1} parent=0
    #allocation2 [shape = 'u8[16384]{0}', space=vmem, size = 0x4000, scoped, tag = 'input window, operand 0, single buffered']
    #allocation3 [shape = 's32[2]{0}', space=sflag, size = 0x8, scoped, tag = 'scoped memory for tpu_custom_call.1']
    #allocation4 [shape = 's32[2]{0}', space=sflag, size = 0x8, scoped, tag = 'scoped memory for tpu_custom_call.1']
    #allocation5 [shape = 'u8[32768]{0}', space=vmem, size = 0x8000, scoped, tag = 'input window, operand 1']
    #allocation6 [shape = 's32[2]{0}', space=sflag, size = 0x8, scoped, tag = 'scoped memory for tpu_custom_call.1']
    #allocation7 [shape = 'u8[32768]{0}', space=vmem, size = 0x8000, scoped, tag = 'output window, operand 0']
    %7 = vsyncpa [#allocation3], 0
    %8 = vsyncpa [#allocation6], 0
    %s9 = scalar_lea.sflag [#allocation6], 1
    %10 = vsyncpa %s9, 0
    %11 = vsyncpa [#allocation4], 0
    %s12 = scalar_lea.sflag [#allocation4], 1
    %13 = vsyncpa %s12, 0
    loop: start=0, step=1, limit=4
    $region2: #{tpu_custom_call.1} parent=1 // loop_pre_header
      _
    $region3: #{tpu_custom_call.1} parent=1 // loop_header
      %s15 = sphi 0, %s19
      %p16 = scmp.ge.s32.totalorder %s15, 4
      %s22 = sphi 0, %s34
      %s23 = sphi 0, %s30
      %s24 = sphi 0, %s22
      %s25 = sphi 0, %s23
      %s26 = sphi 0, %s24
      %s27 = sphi 0, %s25
      %s35 = sphi 0, %s35
      %s37 = sphi 0, %s35
      %s38 = sphi 0, %s37
      %s52 = sphi 0, %s38
      %s60 = sphi 0, %s62
      %s63 = sphi 0, %s60
      %s64 = sphi 0, %s63
      %s80 = sphi 0, %s64
      %s88 = sphi 0, %s90
      %s91 = sphi 0, %s88
      %s92 = sphi 0, %s91
      %s108 = sphi 0, %s92
    $region4: #{tpu_custom_call.1} parent=1 // loop_header_branch
      %18 = sbr.rel (%p16) target = $region8
    $region5: #{tpu_custom_call.1} parent=1 // loop_body
      %s20 = ssub.s32 %s15, 1
      %s21 = ssub.s32 %s15, 2
      %s28 = sadd.s32 1, %s23
      %p29 = scmp.ge.s32.totalorder %s28, 1
      %s30 = scalar_select %p29, 0, %s28
      %s31 = sadd.s32 1, %s22
      %s32 = scalar_select %p29, %s31, %s22
      %p33 = scmp.ge.s32.totalorder %s32, 2
      %s34 = scalar_select %p33, 0, %s32
      %s36 = sadd.s32 %s35, 1
      %p39 = scmp.eq.s32.totalorder %s15, 1
      %p40 = scmp.ne.s32.totalorder %s35, %s37
      %p41 = scmp.eq.s32.totalorder %s15, 0
      %p42 = por %p40, %p41
      %p43 = scmp.ne.s32.totalorder %s35, %s37
      %p44 = scmp.eq.s32.totalorder %s20, 1
      %p45 = por %p43, %p44
      %p46 = scmp.ne.s32.totalorder %s37, %s38
      %p47 = scmp.eq.s32.totalorder %s20, 0
      %p48 = por %p46, %p47
      %p49 = scmp.ne.s32.totalorder %s37, %s38
      %p50 = scmp.eq.s32.totalorder %s21, 1
      %p51 = por %p49, %p50
      %p53 = scmp.ne.s32.totalorder %s38, %s52
      %p54 = scmp.eq.s32.totalorder %s21, 0
      %p55 = por %p53, %p54
      %s56 = ssub.s32 %s22, %s34
      %s57 = ssub.s32 %s23, %s30
      %s58 = sor.u32 %s56, %s57
      %p59 = scmp.eq.s32.totalorder %s58, 0
      %s61 = sadd.s32 %s60, 1
      %s62 = scalar_select %p59, %s60, %s61
      %p65 = pneg %p59
      %p66 = scmp.eq.s32.totalorder %s15, 1
      %p67 = por %p65, %p66
      %p68 = scmp.ne.s32.totalorder %s60, %s63
      %p69 = scmp.eq.s32.totalorder %s15, 0
      %p70 = por %p68, %p69
      %p71 = scmp.ne.s32.totalorder %s60, %s63
      %p72 = scmp.eq.s32.totalorder %s20, 1
      %p73 = por %p71, %p72
      %p74 = scmp.ne.s32.totalorder %s63, %s64
      %p75 = scmp.eq.s32.totalorder %s20, 0
      %p76 = por %p74, %p75
      %p77 = scmp.ne.s32.totalorder %s63, %s64
      %p78 = scmp.eq.s32.totalorder %s21, 1
      %p79 = por %p77, %p78
      %p81 = scmp.ne.s32.totalorder %s64, %s80
      %p82 = scmp.eq.s32.totalorder %s21, 0
      %p83 = por %p81, %p82
      %s84 = ssub.s32 %s22, %s34
      %s85 = ssub.s32 %s23, %s30
      %s86 = sor.u32 %s84, %s85
      %p87 = scmp.eq.s32.totalorder %s86, 0
      %s89 = sadd.s32 %s88, 1
      %s90 = scalar_select %p87, %s88, %s89
      %p93 = pneg %p87
      %p94 = scmp.eq.s32.totalorder %s15, 1
      %p95 = por %p93, %p94
      %p96 = scmp.ne.s32.totalorder %s88, %s91
      %p97 = scmp.eq.s32.totalorder %s15, 0
      %p98 = por %p96, %p97
      %p99 = scmp.ne.s32.totalorder %s88, %s91
      %p100 = scmp.eq.s32.totalorder %s20, 1
      %p101 = por %p99, %p100
      %p102 = scmp.ne.s32.totalorder %s91, %s92
      %p103 = scmp.eq.s32.totalorder %s20, 0
      %p104 = por %p102, %p103
      %p105 = scmp.ne.s32.totalorder %s91, %s92
      %p106 = scmp.eq.s32.totalorder %s21, 1
      %p107 = por %p105, %p106
      %p109 = scmp.ne.s32.totalorder %s92, %s108
      %p110 = scmp.eq.s32.totalorder %s21, 0
      %p111 = por %p109, %p110
      %p112 = scmp.le.s32.totalorder 1, %s15
      %p113 = scmp.lt.s32.totalorder %s15, 3
      %p114 = pnand %p112, %p113
      %p115 = pneg %p114
      // Predicated region
      $region9: #{tpu_custom_call.1} parent=5 // pred_check
        _
      $region10: #{tpu_custom_call.1} parent=5 // pred_check_branch
        %117 = sbr.rel (%p114) target = $region12
      $region11: #{tpu_custom_call.1} parent=5 // pred_region
        %s118 = ssub.s32 %s15, 1
        // Predicated region
        $region13: #{tpu_custom_call.1} parent=11 // pred_check
          %p119 = pneg %p48
        $region14: #{tpu_custom_call.1} parent=11 // pred_check_branch
          %121 = sbr.rel (%p119) target = $region16
        $region15: #{tpu_custom_call.1} parent=11 // pred_region
          %123 = vsyncadd [#allocation3], 0
          %s124 = sshll.u32 %s0, 4
          %s125 = int_to_ptr.hbm [resolvable:$true] %s124
          %s126 = sshll.u32 [#allocation2], 4
          %s127 = int_to_ptr.vmem [resolvable:$true] %s126
          %132 = dma.hbm_to_vmem [thread:$0]  %s125, 512, %s127, [#allocation3], 128, 128, 8
        $region16: #{tpu_custom_call.1} parent=11 // pred_fallthru
          _
      $region12: #{tpu_custom_call.1} parent=5 // pred_fallthru
        _
      %p133 = scmp.lt.s32.totalorder %s15, 2
      // Predicated region
      $region17: #{tpu_custom_call.1} parent=5 // pred_check
        %p134 = pneg %p133
      $region18: #{tpu_custom_call.1} parent=5 // pred_check_branch
        %136 = sbr.rel (%p134) target = $region20
      $region19: #{tpu_custom_call.1} parent=5 // pred_region
        // Predicated region
        $region21: #{tpu_custom_call.1} parent=19 // pred_check
          %p137 = pneg %p70
        $region22: #{tpu_custom_call.1} parent=19 // pred_check_branch
          %139 = sbr.rel (%p137) target = $region24
        $region23: #{tpu_custom_call.1} parent=19 // pred_region
          %s140 = sand.u32 %s60, 1
          %s141 = scalar_lea.sflag [#allocation6], %s140
          %s142 = sand.u32 %s60, 1
          %s143 = smul.addr %s142, 32
          %s144 = scalar_lea.vmem [#allocation5], %s143
          %146 = vsyncadd %s141, 0
          %s147 = smul.addr %s22, 4
          %s148 = sadd.s32 %s23, %s147
          %s149 = smul.addr %s148, 8
          %s150 = scalar_lea.hbm %s1, %s149
          %s151 = sshll.u32 %s150, 4
          %s152 = int_to_ptr.hbm [resolvable:$true] %s151
          %s153 = sshll.u32 %s144, 4
          %s154 = int_to_ptr.vmem [resolvable:$true] %s153
          %159 = dma.hbm_to_vmem [thread:$0]  %s152, 512, %s154, %s141, 128, 128, 8
        $region24: #{tpu_custom_call.1} parent=19 // pred_fallthru
          _
      $region20: #{tpu_custom_call.1} parent=5 // pred_fallthru
        _
      %p160 = scmp.le.s32.totalorder 1, %s15
      %p161 = scmp.lt.s32.totalorder %s15, 3
      %p162 = pnand %p160, %p161
      %p163 = pneg %p162
      // Predicated region
      $region25: #{tpu_custom_call.1} parent=5 // pred_check
        _
      $region26: #{tpu_custom_call.1} parent=5 // pred_check_branch
        %165 = sbr.rel (%p162) target = $region28
      $region27: #{tpu_custom_call.1} parent=5 // pred_region
        %s166 = ssub.s32 %s15, 1
        // Predicated region
        $region29: #{tpu_custom_call.1} parent=27 // pred_check
          %p167 = pneg %p48
        $region30: #{tpu_custom_call.1} parent=27 // pred_check_branch
          %169 = sbr.rel (%p167) target = $region32
        $region31: #{tpu_custom_call.1} parent=27 // pred_region
          %171 = dma.done [#allocation3], 512
        $region32: #{tpu_custom_call.1} parent=27 // pred_fallthru
          _
        %s172 = sand.u32 %s63, 1
        %s173 = scalar_lea.sflag [#allocation6], %s172
        %s174 = sand.u32 %s63, 1
        %s175 = smul.addr %s174, 32
        %s176 = scalar_lea.vmem [#allocation5], %s175
        // Predicated region
        $region33: #{tpu_custom_call.1} parent=27 // pred_check
          %p177 = pneg %p76
        $region34: #{tpu_custom_call.1} parent=27 // pred_check_branch
          %179 = sbr.rel (%p177) target = $region36
        $region35: #{tpu_custom_call.1} parent=27 // pred_region
          %181 = dma.done %s173, 512
        $region36: #{tpu_custom_call.1} parent=27 // pred_fallthru
          _
        %p182 = pneg %p48
        %p183 = pneg %p45
        %s184 = sand.u32 %s63, 1
        %s185 = scalar_lea.sflag [#allocation6], %s184
        %s186 = sand.u32 %s63, 1
        %s187 = smul.addr %s186, 32
        %s188 = scalar_lea.vmem [#allocation5], %s187
        %p189 = pneg %p76
        %p190 = pneg %p73
        %p191 = pneg %p104
        %p192 = pneg %p101
        %s193 = sand.u32 %s91, 1
        %s194 = scalar_lea.sflag [#allocation4], %s193
        %s195 = sand.u32 %s91, 1
        %s196 = smul.addr %s195, 32
        %s197 = scalar_lea.vmem [#allocation7], %s196
        %v198 = vld [vmem:[#allocation2] sm:$0xff]
        %v199 = vld [vmem:[#allocation2 + $0x8] sm:$0xff]
        %v200 = vld [vmem:[#allocation2 + $0x10] sm:$0xff]
        %v201 = vld [vmem:[#allocation2 + $0x18] sm:$0xff]
        %v202 = vld [vmem:[%s176] sm:$0xff]
        %v203 = vld [vmem:[%s176 + $0x8] sm:$0xff]
        %v204 = vld [vmem:[%s176 + $0x10] sm:$0xff]
        %v205 = vld [vmem:[%s176 + $0x18] sm:$0xff]
        %vm206 = vcmask 261120
        %v208 = vsel %vm206, %v198, 0
        %v211 = vsel %vm206, %v199, 0
        %v214 = vsel %vm206, %v200, 0
        %v217 = vsel %vm206, %v201, 0
        %219 = vmatpush.msra.mxu0 0.0
        %220 = vmatpush.msra.mxu0 0.0
        %221 = vmatpush.msra.mxu0 0.0
        %222 = vmatpush.msra.mxu0 0.0
        %223 = vmatpush.msra.mxu0 0.0
        %224 = vmatpush.msra.mxu0 0.0
        %225 = vmatpush.msra.mxu0 0.0
        %226 = vmatpush.msra.mxu0 0.0
        %227 = vmatpush.msra.mxu0 0.0
        %228 = vmatpush.msra.mxu0 0.0
        %229 = vmatpush.msra.mxu0 0.0
        %230 = vmatpush.msra.mxu0 0.0
        %231 = vmatpush.msra.mxu0 %v205
        %232 = vmatpush.msra.mxu0 %v204
        %233 = vmatpush.msra.mxu0 %v203
        %234 = vmatpush.msra.mxu0 %v202
        %235 = vmatmul.f32.gmra.mxu0 %v208
        %v236 = vpop.f32.mrf.mxu0
        %v237 = vadd.f32 %v202, %v236
        %238 = vmatmul.f32.gmra.mxu0 %v211
        %v239 = vpop.f32.mrf.mxu0
        %v240 = vadd.f32 %v203, %v239
        %241 = vmatmul.f32.gmra.mxu0 %v214
        %v242 = vpop.f32.mrf.mxu0
        %v243 = vadd.f32 %v204, %v242
        %244 = vmatmul.f32.gmra.mxu0 %v217
        %v245 = vpop.f32.mrf.mxu0
        %v246 = vadd.f32 %v205, %v245
        %247 = vdwg.mxu0
        %248 = vst [vmem:[%s197] sm:$0xff] %v237
        %249 = vst [vmem:[%s197 + $0x8] sm:$0xff] %v240
        %250 = vst [vmem:[%s197 + $0x10] sm:$0xff] %v243
        %251 = vst [vmem:[%s197 + $0x18] sm:$0xff] %v246
        %s252 = sand.u32 %s91, 1
        %s253 = scalar_lea.sflag [#allocation4], %s252
        %s254 = sand.u32 %s91, 1
        %s255 = smul.addr %s254, 32
        %s256 = scalar_lea.vmem [#allocation7], %s255
        // Predicated region
        $region37: #{tpu_custom_call.1} parent=27 // pred_check
          %p257 = pneg %p101
        $region38: #{tpu_custom_call.1} parent=27 // pred_check_branch
          %259 = sbr.rel (%p257) target = $region40
        $region39: #{tpu_custom_call.1} parent=27 // pred_region
          %261 = vsyncadd %s253, 0
          %s262 = smul.addr %s24, 4
          %s263 = sadd.s32 %s25, %s262
          %s264 = smul.addr %s263, 8
          %s265 = scalar_lea.hbm %s2, %s264
          %s266 = sshll.u32 %s256, 4
          %s267 = int_to_ptr.vmem [resolvable:$true] %s266
          %s268 = sshll.u32 %s265, 4
          %s269 = int_to_ptr.hbm [resolvable:$true] %s268
          %274 = dma.vmem_to_hbm [thread:$0]  %s267, 512, %s269, %s253, 128, 128, 8
        $region40: #{tpu_custom_call.1} parent=27 // pred_fallthru
          _
      $region28: #{tpu_custom_call.1} parent=5 // pred_fallthru
        _
      %p275 = scmp.le.s32.totalorder 2, %s15
      // Predicated region
      $region41: #{tpu_custom_call.1} parent=5 // pred_check
        %p276 = pneg %p275
      $region42: #{tpu_custom_call.1} parent=5 // pred_check_branch
        %278 = sbr.rel (%p276) target = $region44
      $region43: #{tpu_custom_call.1} parent=5 // pred_region
        %s279 = ssub.s32 %s15, 2
        // Predicated region
        $region45: #{tpu_custom_call.1} parent=43 // pred_check
          %p280 = pneg %p107
        $region46: #{tpu_custom_call.1} parent=43 // pred_check_branch
          %282 = sbr.rel (%p280) target = $region48
        $region47: #{tpu_custom_call.1} parent=43 // pred_region
          %s283 = sand.u32 %s92, 1
          %s284 = scalar_lea.sflag [#allocation4], %s283
          %s285 = sand.u32 %s92, 1
          %s286 = smul.addr %s285, 32
          %s287 = scalar_lea.vmem [#allocation7], %s286
          %289 = dma.done %s284, 512
        $region48: #{tpu_custom_call.1} parent=43 // pred_fallthru
          _
      $region44: #{tpu_custom_call.1} parent=5 // pred_fallthru
        _
    $region6: #{tpu_custom_call.1} parent=1 // loop_footer
      %s19 = sadd.s32 1, %s15
    $region7: #{tpu_custom_call.1} parent=1 // loop_footer_branch
      %14 = sbr.rel target = $region3
    $region8: #{tpu_custom_call.1} parent=1 // loop_exit
      _
    %290 = vsyncpa [#allocation3], 1
    %s291 = scalar_lea.sflag [#allocation3], 1
    %292 = vsyncpa %s291, 1
    %293 = vsyncpa [#allocation6], 1
    %s294 = scalar_lea.sflag [#allocation6], 1
    %295 = vsyncpa %s294, 1
    %296 = vsyncpa [#allocation4], 1
    %s297 = scalar_lea.sflag [#allocation4], 1
    %298 = vsyncpa %s297, 1

</llo_original>
